<compile_context>
chip_gen: v5e
topology: v5e:2x2
jax: 0.10.0
libtpu: 0.0.40
codegen_flags: <defaults>
</compile_context>

<pallas_src>
import jax
import jax.numpy as jnp
from jax.experimental import pallas as pl
from jax.experimental.pallas import tpu as pltpu

LANE = 128
SUBLANE = 8


def _round_up(n, m):
    return ((n + m - 1) // m) * m


# ---------------------------------------------------------------------------
# Pallas kernel: fused Linear + ReLU + Linear on one batch tile
# ---------------------------------------------------------------------------
def combined_mlp_kernel(
    x_ref,    # (TB, D)   f32 input tile (streamed; cast to bf16 in-register)
    w1_ref,   # (D, Hp)   bf16 first-layer weight (resident)
    b1_ref,   # (1, Hp)   f32 first-layer bias (resident)
    w2_ref,   # (Hp, C)   bf16 second-layer weight (resident)
    b2_ref,   # (1, C)    f32 second-layer bias (resident)
    out_ref,  # (TB, C)   f32 logits tile (unpadded C)
):
    # Layer 1: cast the f32 tile to bf16 in-register, MXU matmul, f32 accum,
    # bias + ReLU in f32.
    x = x_ref[...].astype(jnp.bfloat16)
    h = jnp.dot(x, w1_ref[...], preferred_element_type=jnp.float32)
    h = jnp.maximum(h + b1_ref[...], 0.0)

    # Layer 2: single bf16 cast of the hidden slab, bf16 matmul, f32 accum.
    logits = jnp.dot(
        h.astype(jnp.bfloat16), w2_ref[...], preferred_element_type=jnp.float32
    ) + b2_ref[...]

    out_ref[...] = logits.astype(out_ref.dtype)


# ---------------------------------------------------------------------------
# One-time parameter preparation (module "init"): pad hidden dim to 128 lanes
# and cast weights to bf16.  Zero padding keeps the math identical.
# ---------------------------------------------------------------------------
def prepare_params(w1, b1, w2, b2):
    D, H = w1.shape
    Hp = _round_up(H, LANE)
    w1_p = jnp.pad(w1, ((0, 0), (0, Hp - H))).astype(jnp.bfloat16)
    b1_p = jnp.pad(b1.reshape(1, -1), ((0, 0), (0, Hp - H))).astype(jnp.float32)
    w2_p = jnp.pad(w2, ((0, Hp - H), (0, 0))).astype(jnp.bfloat16)
    b2_p = b2.reshape(1, -1).astype(jnp.float32)
    return w1_p, b1_p, w2_p, b2_p


def _select_tile_b(B):
    """Batch-tile size: 1 tile for small/medium B (single-TC friendly),
    >=2 tiles of <=512 rows for large B (v7x megacore)."""
    b8 = _round_up(B, SUBLANE)
    if b8 <= 256:
        return b8
    return min(512, _round_up(pl.cdiv(b8, 2), LANE))


# ---------------------------------------------------------------------------
# Forward wrapper: BlockSpecs, grid, minimal (sublane-only) batch padding
# ---------------------------------------------------------------------------
@jax.jit
def combined_mlp_forward(x, w1_p, b1_p, w2_p, b2_p):
    B, D = x.shape
    Hp = w1_p.shape[1]
    C = w2_p.shape[1]

    tile_b = _select_tile_b(B)
    B_pad = _round_up(B, tile_b)
    if B_pad != B:                     # ragged batch: zero-pad rows (rare path)
        x = jnp.pad(x, ((0, B_pad - B), (0, 0)))

    grid = (B_pad // tile_b,)

    def batch_tile(i):
        return (i, 0)

    def resident(i):
        return (0, 0)

    flops = 2 * B_pad * (D * Hp + Hp * C)
    bytes_accessed = (
        B_pad * D * 4          # x (f32)
        + D * Hp * 2 + Hp * 4  # W1 (bf16) + b1 (f32)
        + Hp * C * 2 + C * 4   # W2 (bf16) + b2 (f32)
        + B_pad * C * 4        # output (f32, unpadded C)
    )

    out = pl.pallas_call(
        combined_mlp_kernel,
        out_shape=jax.ShapeDtypeStruct((B_pad, C), jnp.float32),
        grid=grid,
        in_specs=[
            pl.BlockSpec((tile_b, D), batch_tile),   # streamed input tile
            pl.BlockSpec((D, Hp), resident),         # weights: constant index
            pl.BlockSpec((1, Hp), resident),         #   map -> stay resident
            pl.BlockSpec((Hp, C), resident),
            pl.BlockSpec((1, C), resident),
        ],
        out_specs=pl.BlockSpec((tile_b, C), batch_tile),
        compiler_params=pltpu.CompilerParams(
            dimension_semantics=("parallel",),       # megacore sharding on v7x
            vmem_limit_bytes=32 * 1024 * 1024,       # explicit budget, all gens
        ),
        cost_estimate=pl.CostEstimate(
            flops=flops, transcendentals=0, bytes_accessed=bytes_accessed
        ),
    )(x, w1_p, b1_p, w2_p, b2_p)

    return out[:B] if B_pad != B else out


# ---------------------------------------------------------------------------
# Pure-JAX reference with the same bf16 operand quantization (for checking)
# ---------------------------------------------------------------------------
def forward_ref(x, w1, b1, w2, b2):
    xb = x.astype(jnp.bfloat16).astype(jnp.float32)
    w1b = w1.astype(jnp.bfloat16).astype(jnp.float32)
    w2b = w2.astype(jnp.bfloat16).astype(jnp.float32)
    h = jnp.maximum(xb @ w1b + b1.reshape(1, -1), 0.0)
    hb = h.astype(jnp.bfloat16).astype(jnp.float32)
    return hb @ w2b + b2.reshape(1, -1)


# ---------------------------------------------------------------------------
# Main
# ---------------------------------------------------------------------------
if __name__ == "__main__":
    B = 16
    INPUT_DIM = 32
    HIDDEN_DIM = 64  # module default
    OUTPUT_DIM = 4   # module default

    key = jax.random.PRNGKey(0)
    k_x, k_w1, k_b1, k_w2, k_b2 = jax.random.split(key, 5)

    x = jax.random.normal(k_x, (B, INPUT_DIM), dtype=jnp.float32)
    w1 = jax.random.normal(k_w1, (INPUT_DIM, HIDDEN_DIM), jnp.float32) * 0.1
    b1 = jax.random.normal(k_b1, (HIDDEN_DIM,), jnp.float32) * 0.1
    w2 = jax.random.normal(k_w2, (HIDDEN_DIM, OUTPUT_DIM), jnp.float32) * 0.1
    b2 = jax.random.normal(k_b2, (OUTPUT_DIM,), jnp.float32) * 0.1

    # Weight padding/casting happens once (module init), not per forward.
    params = prepare_params(w1, b1, w2, b2)

    y = combined_mlp_forward(x, *params)
    y = jax.block_until_ready(y)

    ref = forward_ref(x, w1, b1, w2, b2)
    assert y.shape == (B, OUTPUT_DIM)
    assert jnp.allclose(y, ref, atol=5e-3, rtol=5e-3), "mismatch vs reference"

    print("KERNEL_OK")
</pallas_src>

<mosaic_0001>
module attributes {stable_mosaic.version = 11 : i64} {
  func.func @combined_mlp_kernel(%arg0: i32, %arg1: memref<16x32xf32, #tpu.memory_space<vmem>>, %arg2: memref<32x128xbf16, #tpu.memory_space<vmem>>, %arg3: memref<1x128xf32, #tpu.memory_space<vmem>>, %arg4: memref<128x4xbf16, #tpu.memory_space<vmem>>, %arg5: memref<1x4xf32, #tpu.memory_space<vmem>>, %arg6: memref<16x4xf32, #tpu.memory_space<vmem>>) attributes {dimension_semantics = [#tpu.dimension_semantics<parallel>], iteration_bounds = array<i64: 1>, scalar_prefetch = 0 : i64, scratch_operands = 0 : i64, tpu.core_type = #tpu.core_type<tc>, window_params = [{transform_indices = @transform_0, window_bounds = array<i64: 16, 32>}, {pipeline_mode = #tpu.pipeline_mode<synchronous>, transform_indices = @transform_1, window_bounds = array<i64: 32, 128>}, {pipeline_mode = #tpu.pipeline_mode<synchronous>, transform_indices = @transform_2, window_bounds = array<i64: 1, 128>}, {pipeline_mode = #tpu.pipeline_mode<synchronous>, transform_indices = @transform_3, window_bounds = array<i64: 128, 4>}, {pipeline_mode = #tpu.pipeline_mode<synchronous>, transform_indices = @transform_4, window_bounds = array<i64: 1, 4>}, {transform_indices = @transform_5, window_bounds = array<i64: 16, 4>}]} {
    %c0 = arith.constant 0 : index
    %c0_0 = arith.constant 0 : index
    %0 = vector.load %arg1[%c0, %c0_0] : memref<16x32xf32, #tpu.memory_space<vmem>>, vector<16x32xf32>
    %1 = arith.truncf %0 : vector<16x32xf32> to vector<16x32xbf16>
    %c0_1 = arith.constant 0 : index
    %c0_2 = arith.constant 0 : index
    %2 = vector.load %arg2[%c0_1, %c0_2] : memref<32x128xbf16, #tpu.memory_space<vmem>>, vector<32x128xbf16>
    %cst = arith.constant dense<0.000000e+00> : vector<16x128xf32>
    %3 = tpu.matmul %1, %2, %cst {dimension_numbers = #tpu.dot_dimension_numbers<[1], [0], [0], [1], [0, 0, 1, 1], [], []>} : vector<16x32xbf16>, vector<32x128xbf16>, vector<16x128xf32> -> vector<16x128xf32>
    %c0_3 = arith.constant 0 : index
    %c0_4 = arith.constant 0 : index
    %4 = vector.load %arg3[%c0_3, %c0_4] : memref<1x128xf32, #tpu.memory_space<vmem>>, vector<1x128xf32>
    %5 = vector.broadcast %4 : vector<1x128xf32> to vector<16x128xf32>
    %6 = arith.addf %3, %5 : vector<16x128xf32>
    %cst_5 = arith.constant 0.000000e+00 : f32
    %7 = vector.broadcast %cst_5 : f32 to vector<16x128xf32>
    %8 = arith.maximumf %6, %7 : vector<16x128xf32>
    %9 = arith.truncf %8 : vector<16x128xf32> to vector<16x128xbf16>
    %c0_6 = arith.constant 0 : index
    %c0_7 = arith.constant 0 : index
    %10 = vector.load %arg4[%c0_6, %c0_7] : memref<128x4xbf16, #tpu.memory_space<vmem>>, vector<128x4xbf16>
    %cst_8 = arith.constant dense<0.000000e+00> : vector<16x4xf32>
    %11 = tpu.matmul %9, %10, %cst_8 {dimension_numbers = #tpu.dot_dimension_numbers<[1], [0], [0], [1], [0, 0, 1, 1], [], []>} : vector<16x128xbf16>, vector<128x4xbf16>, vector<16x4xf32> -> vector<16x4xf32>
    %c0_9 = arith.constant 0 : index
    %c0_10 = arith.constant 0 : index
    %12 = vector.load %arg5[%c0_9, %c0_10] : memref<1x4xf32, #tpu.memory_space<vmem>>, vector<1x4xf32>
    %13 = vector.broadcast %12 : vector<1x4xf32> to vector<16x4xf32>
    %14 = arith.addf %11, %13 : vector<16x4xf32>
    %c0_11 = arith.constant 0 : index
    %c0_12 = arith.constant 0 : index
    %15 = vector.load %arg6[%c0_11, %c0_12] : memref<16x4xf32, #tpu.memory_space<vmem>>, vector<16x4xf32>
    tpu.vector_store %arg6[%c0_11, %c0_12], %14 {strides = array<i32>} : memref<16x4xf32, #tpu.memory_space<vmem>>, vector<16x4xf32>,
    return
  }
  func.func @transform_0(%arg0: i32) -> (i32, i32) {
    %c0_i32 = arith.constant 0 : i32
    %c0_i32_0 = arith.constant 0 : i32
    return %arg0, %c0_i32 : i32, i32
  }
  func.func @transform_1(%arg0: i32) -> (i32, i32) {
    %c0_i32 = arith.constant 0 : i32
    %c0_i32_0 = arith.constant 0 : i32
    %c0_i32_1 = arith.constant 0 : i32
    return %c0_i32, %c0_i32_0 : i32, i32
  }
  func.func @transform_2(%arg0: i32) -> (i32, i32) {
    %c0_i32 = arith.constant 0 : i32
    %c0_i32_0 = arith.constant 0 : i32
    %c0_i32_1 = arith.constant 0 : i32
    return %c0_i32, %c0_i32_0 : i32, i32
  }
  func.func @transform_3(%arg0: i32) -> (i32, i32) {
    %c0_i32 = arith.constant 0 : i32
    %c0_i32_0 = arith.constant 0 : i32
    %c0_i32_1 = arith.constant 0 : i32
    return %c0_i32, %c0_i32_0 : i32, i32
  }
  func.func @transform_4(%arg0: i32) -> (i32, i32) {
    %c0_i32 = arith.constant 0 : i32
    %c0_i32_0 = arith.constant 0 : i32
    %c0_i32_1 = arith.constant 0 : i32
    return %c0_i32, %c0_i32_0 : i32, i32
  }
  func.func @transform_5(%arg0: i32) -> (i32, i32) {
    %c0_i32 = arith.constant 0 : i32
    %c0_i32_0 = arith.constant 0 : i32
    return %arg0, %c0_i32 : i32, i32
  }
}

</mosaic_0001>

<llo_original>
// kernel: combined_mlp_forward.1
$region0: #{combined_mlp_forward.1}
  #allocation0 [shape = 'u32[]', space=smem, size = 0x4, offset = 0x4, fixed_abs, tag = 'smem constant byte address 0x4 - core index']
  #allocation1 [shape = 'u32[72,128]{1,0:T(1,128)}', space=vmem, size = 0x9000, scoped, tag = 'internal scratch']
  %s0 = inlined_call_operand.vmem [shape: f32[16,32], index: 0, kind: input, shape index: {}]
  %s1 = inlined_call_operand.vmem [shape: bf16[32,128], index: 1, kind: input, shape index: {}]
  %s2 = inlined_call_operand.vmem [shape: f32[1,128], index: 2, kind: input, shape index: {}]
  %s3 = inlined_call_operand.vmem [shape: bf16[128,4], index: 3, kind: input, shape index: {}]
  %s4 = inlined_call_operand.vmem [shape: f32[1,4], index: 4, kind: input, shape index: {}]
  %s5 = inlined_call_operand.vmem [shape: f32[16,4], index: 5, kind: output, shape index: {}]
  %s6 = sld [smem:[#allocation0]]
  $region30: #{combined_mlp_forward.1} parent=0
    _
  %s8 = ssub.s32 1, %s6
  %s9 = scalar_select 0, %s8, %s6
  // Predicated region
  $region2: #{combined_mlp_forward.1} parent=0 // pred_check
    _
  $region3: #{combined_mlp_forward.1} parent=0 // pred_check_branch
    %11 = sbr.rel (0) target = $region5
  $region4: #{combined_mlp_forward.1} parent=0 // pred_region
    _
  $region5: #{combined_mlp_forward.1} parent=0 // pred_fallthru
    _
  // Predicated region
  $region6: #{combined_mlp_forward.1} parent=0 // pred_check
    _
  $region7: #{combined_mlp_forward.1} parent=0 // pred_check_branch
    %13 = sbr.rel (0) target = $region9
  $region8: #{combined_mlp_forward.1} parent=0 // pred_region
    _
  $region9: #{combined_mlp_forward.1} parent=0 // pred_fallthru
    _
  // Predicated region
  $region10: #{combined_mlp_forward.1} parent=0 // pred_check
    _
  $region11: #{combined_mlp_forward.1} parent=0 // pred_check_branch
    %15 = sbr.rel (0) target = $region13
  $region12: #{combined_mlp_forward.1} parent=0 // pred_region
    _
  $region13: #{combined_mlp_forward.1} parent=0 // pred_fallthru
    _
  // Predicated region
  $region14: #{combined_mlp_forward.1} parent=0 // pred_check
    _
  $region15: #{combined_mlp_forward.1} parent=0 // pred_check_branch
    %17 = sbr.rel (0) target = $region17
  $region16: #{combined_mlp_forward.1} parent=0 // pred_region
    _
  $region17: #{combined_mlp_forward.1} parent=0 // pred_fallthru
    _
  // Predicated region
  $region18: #{combined_mlp_forward.1} parent=0 // pred_check
    _
  $region19: #{combined_mlp_forward.1} parent=0 // pred_check_branch
    %19 = sbr.rel (0) target = $region21
  $region20: #{combined_mlp_forward.1} parent=0 // pred_region
    _
  $region21: #{combined_mlp_forward.1} parent=0 // pred_fallthru
    _
  %v21 = vld [vmem:[%s0] sm:$0xff]
  %v22 = vld [vmem:[%s0 + $0x8] sm:$0xff]
  %v23 = vpack.c.bf16 %v22, %v21
  %v24 = vld [vmem:[%s1] sm:$0xf]
  %v25 = vld [vmem:[%s1 + $0x4] sm:$0xf]
  %v26 = vld [vmem:[%s1 + $0x8] sm:$0xf]
  %v27 = vld [vmem:[%s1 + $0xc] sm:$0xf]
  %v28 = vld [vmem:[%s2] sm:$0x1]
  %v30 = vperm.slane %v28, 0
  %v36 = vunpack.c.l.b16 %v24
  %v37 = vunpack.c.l.b16 %v25
  %v38 = vunpack.c.l.b16 %v26
  %v39 = vunpack.c.l.b16 %v27
  %v40 = vpack.c.b16 %v37, %v36
  %v41 = vpack.c.b16 %v39, %v38
  %vm44 = vcmask 261120
  %v46 = vsel %vm44, %v23, 0
  %48 = vmatpush.bf16.msra.mxu0 0
  %49 = vmatpush.bf16.msra.mxu0 0
  %50 = vmatpush.bf16.msra.mxu0 0
  %51 = vmatpush.bf16.msra.mxu0 0
  %52 = vmatpush.bf16.msra.mxu0 0
  %53 = vmatpush.bf16.msra.mxu0 0
  %54 = vmatpush.bf16.msra.mxu0 %v41
  %55 = vmatpush.bf16.msra.mxu0 %v40
  %56 = vmatmul.bf16.gmra.mxu0 %v46
  %v57 = vpop.f32.mrf.mxu0
  %v58 = vadd.f32 %v30, %v57
  %v59 = vpop.f32.mrf.mxu0
  %v60 = vadd.f32 %v30, %v59
  %61 = vdwg.mxu0
  %v62 = vmax.f32 %v58, 0.0
  %v63 = vmax.f32 %v60, 0.0
  %v64 = vpack.c.bf16 %v63, %v62
  %v65 = vld [vmem:[%s3] sm:$0xf]
  %v66 = vld [vmem:[%s3 + $0x4] sm:$0xf]
  %v67 = vld [vmem:[%s3 + $0x8] sm:$0xf]
  %v68 = vld [vmem:[%s3 + $0xc] sm:$0xf]
  %v69 = vld [vmem:[%s3 + $0x10] sm:$0xf]
  %v70 = vld [vmem:[%s3 + $0x14] sm:$0xf]
  %v71 = vld [vmem:[%s3 + $0x18] sm:$0xf]
  %v72 = vld [vmem:[%s3 + $0x1c] sm:$0xf]
  %v73 = vld [vmem:[%s3 + $0x20] sm:$0xf]
  %v74 = vld [vmem:[%s3 + $0x24] sm:$0xf]
  %v75 = vld [vmem:[%s3 + $0x28] sm:$0xf]
  %v76 = vld [vmem:[%s3 + $0x2c] sm:$0xf]
  %v77 = vld [vmem:[%s3 + $0x30] sm:$0xf]
  %v78 = vld [vmem:[%s3 + $0x34] sm:$0xf]
  %v79 = vld [vmem:[%s3 + $0x38] sm:$0xf]
  %v80 = vld [vmem:[%s3 + $0x3c] sm:$0xf]
  %v81 = vld [vmem:[%s4] sm:$0x1]
  %v83 = vperm.slane %v81, 0
  %v101 = vunpack.c.l.b16 %v65
  %v102 = vunpack.c.l.b16 %v66
  %v103 = vunpack.c.l.b16 %v67
  %v104 = vunpack.c.l.b16 %v68
  %v105 = vunpack.c.l.b16 %v69
  %v106 = vunpack.c.l.b16 %v70
  %v107 = vunpack.c.l.b16 %v71
  %v108 = vunpack.c.l.b16 %v72
  %v109 = vunpack.c.l.b16 %v73
  %v110 = vunpack.c.l.b16 %v74
  %v111 = vunpack.c.l.b16 %v75
  %v112 = vunpack.c.l.b16 %v76
  %v113 = vunpack.c.l.b16 %v77
  %v114 = vunpack.c.l.b16 %v78
  %v115 = vunpack.c.l.b16 %v79
  %v116 = vunpack.c.l.b16 %v80
  %v117 = vpack.c.b16 %v102, %v101
  %v118 = vpack.c.b16 %v104, %v103
  %v119 = vpack.c.b16 %v106, %v105
  %v120 = vpack.c.b16 %v108, %v107
  %v121 = vpack.c.b16 %v110, %v109
  %v122 = vpack.c.b16 %v112, %v111
  %v123 = vpack.c.b16 %v114, %v113
  %v124 = vpack.c.b16 %v116, %v115
  %133 = vmatpush.bf16.msra.mxu0 %v124
  %134 = vmatpush.bf16.msra.mxu0 %v123
  %135 = vmatpush.bf16.msra.mxu0 %v122
  %136 = vmatpush.bf16.msra.mxu0 %v121
  %137 = vmatpush.bf16.msra.mxu0 %v120
  %138 = vmatpush.bf16.msra.mxu0 %v119
  %139 = vmatpush.bf16.msra.mxu0 %v118
  %140 = vmatpush.bf16.msra.mxu0 %v117
  %141 = vmatmul.bf16.gmra.mxu0 %v64
  %v142 = vpop.f32.mrf.mxu0
  %v143 = vadd.f32 %v83, %v142
  %v144 = vpop.f32.mrf.mxu0
  %v145 = vadd.f32 %v83, %v144
  %146 = vdwg.mxu0
  %vm147 = vcmask 31744
  %148 = vst.msk [vmem:[%s5] sm:$0xff] %vm147, %v143
  %149 = vst.msk [vmem:[%s5 + $0x8] sm:$0xff] %vm147, %v145
  // Predicated region
  $region22: #{combined_mlp_forward.1} parent=0 // pred_check
    _
  $region23: #{combined_mlp_forward.1} parent=0 // pred_check_branch
    %151 = sbr.rel (0) target = $region25
  $region24: #{combined_mlp_forward.1} parent=0 // pred_region
    _
  $region25: #{combined_mlp_forward.1} parent=0 // pred_fallthru
    _
  // Predicated region
  $region26: #{combined_mlp_forward.1} parent=0 // pred_check
    _
  $region27: #{combined_mlp_forward.1} parent=0 // pred_check_branch
    %153 = sbr.rel (0) target = $region29
  $region28: #{combined_mlp_forward.1} parent=0 // pred_region
    _
  $region29: #{combined_mlp_forward.1} parent=0 // pred_fallthru
    _

</llo_original>
